<compile_context>
chip_gen: v6e
topology: v6e:2x2x1
jax: 0.10.0
libtpu: 0.0.40
codegen_flags: <defaults>
</compile_context>

<pallas_src>
import functools

import jax
import jax.numpy as jnp
from jax import lax
from jax.experimental import pallas as pl
from jax.experimental.pallas import tpu as pltpu


def _round_up(v, k):
    return ((v + k - 1) // k) * k


def _apply_activation(x, activation):
    if activation == "gelu_approx":
        # tanh approximation of GELU, matching F.gelu(x, approximate='tanh')
        c = 0.7978845608028654  # sqrt(2/pi)
        return 0.5 * x * (1.0 + jnp.tanh(c * (x + 0.044715 * x * x * x)))
    if activation == "relu":
        return jnp.maximum(x, 0.0)
    if activation == "sqrelu":
        r = jnp.maximum(x, 0.0)
        return r * r
    raise ValueError(f"unsupported activation: {activation}")


def fused_mlp_kernel(x_ref, w1_ref, b1_ref, w2_ref, b2_ref, o_ref, acc_ref,
                     *, activation):
    k = pl.program_id(1)

    @pl.when(k == 0)
    def _():
        acc_ref[...] = jnp.zeros_like(acc_ref)

    x = x_ref[...]                       # (tm, in_p)   native dtype
    w1 = w1_ref[...]                     # (th, in_p)   PyTorch layout (hidden, in)
    # x @ W1^T : contract the feature axis of both operands (bf16/f32 goes
    # straight to the MXU with f32 accumulation -- no operand up-cast).
    pre = lax.dot_general(x, w1, (((1,), (1,)), ((), ())),
                          preferred_element_type=jnp.float32)     # (tm, th) f32
    pre = pre + b1_ref[...]              # f32 bias, (1, th) broadcast
    act = _apply_activation(pre, activation)

    w2 = w2_ref[...]                     # (out_p, th)  PyTorch layout (out, hidden)
    # act @ W2^T : cast the activation back to the weight dtype so bf16
    # weights keep the native bf16 MXU path; accumulate into f32 scratch.
    acc_ref[...] += lax.dot_general(act.astype(w2.dtype), w2,
                                    (((1,), (1,)), ((), ())),
                                    preferred_element_type=jnp.float32)

    @pl.when(k == pl.num_programs(1) - 1)
    def _():
        o_ref[...] = (acc_ref[...] + b2_ref[...]).astype(o_ref.dtype)


@functools.partial(jax.jit, static_argnames=("activation", "tm", "th"))
def fused_mlp(x, w1, b1, w2, b2, *, activation="gelu_approx", tm=256, th=512):
    """FusedMLP forward: fc2(act(fc1(x))).

    x:  (..., in_features)
    w1: (hidden, in),  b1: (hidden,)      -- PyTorch nn.Linear layout
    w2: (out, hidden), b2: (out,)
    """
    *lead, in_f = x.shape
    hidden = w1.shape[0]
    out_f = w2.shape[0]

    x2 = x.reshape(-1, in_f)
    m = x2.shape[0]

    # Lane-dense padding: feature axes to multiples of 128 (unmasked vld/vst,
    # full MXU columns); token axis padded to a multiple of the row tile.
    in_p = _round_up(in_f, 128)
    out_p = _round_up(out_f, 128)
    tm_eff = min(tm, _round_up(m, 8))          # multiple of 8 (f32 sublanes)
    m_p = _round_up(m, tm_eff)
    th_eff = min(th, _round_up(hidden, 128))   # hidden reduction tile
    hid_p = _round_up(hidden, th_eff)

    def pad2(a, r, c):
        pr, pc = r - a.shape[0], c - a.shape[1]
        return a if (pr == 0 and pc == 0) else jnp.pad(a, ((0, pr), (0, pc)))

    x2p = pad2(x2, m_p, in_p)                                       # (m_p, in_p)
    w1p = pad2(w1, hid_p, in_p)                                     # (hid_p, in_p)
    w2p = pad2(w2, out_p, hid_p)                                    # (out_p, hid_p)
    b1p = pad2(b1.reshape(1, hidden).astype(jnp.float32), 1, hid_p)  # (1, hid_p)
    b2p = pad2(b2.reshape(1, out_f).astype(jnp.float32), 1, out_p)   # (1, out_p)

    grid = (m_p // tm_eff, hid_p // th_eff)

    itemsize = jnp.dtype(x.dtype).itemsize
    cost = pl.CostEstimate(
        flops=2 * m_p * in_p * hid_p + 2 * m_p * hid_p * out_p,
        transcendentals=(m_p * hid_p) if activation == "gelu_approx" else 0,
        bytes_accessed=(x2p.size + w1p.size + w2p.size + m_p * out_p) * itemsize
        + (b1p.size + b2p.size) * 4,
    )

    kernel = functools.partial(fused_mlp_kernel, activation=activation)

    out = pl.pallas_call(
        kernel,
        out_shape=jax.ShapeDtypeStruct((m_p, out_p), x.dtype),
        grid_spec=pltpu.PrefetchScalarGridSpec(
            num_scalar_prefetch=0,
            grid=grid,
            in_specs=[
                pl.BlockSpec((tm_eff, in_p), lambda i, k: (i, 0)),    # x tile (resident over k)
                pl.BlockSpec((th_eff, in_p), lambda i, k: (k, 0)),    # W1 hidden-tile
                pl.BlockSpec((1, th_eff), lambda i, k: (0, k)),       # b1 hidden-tile
                pl.BlockSpec((out_p, th_eff), lambda i, k: (0, k)),   # W2 hidden-tile
                pl.BlockSpec((1, out_p), lambda i, k: (0, 0)),        # b2
            ],
            out_specs=pl.BlockSpec((tm_eff, out_p), lambda i, k: (i, 0)),
            scratch_shapes=[pltpu.VMEM((tm_eff, out_p), jnp.float32)],
        ),
        compiler_params=pltpu.CompilerParams(
            dimension_semantics=("parallel", "arbitrary"),
            vmem_limit_bytes=64 * 1024 * 1024,
        ),
        cost_estimate=cost,
    )(x2p, w1p, b1p, w2p, b2p)

    return out[:m, :out_f].reshape(*lead, out_f)


if __name__ == "__main__":
    # Small shapes consistent with the module: in_features=32,
    # hidden_features = 4 * in = 128, out_features = in = 32.
    batch, seq, in_features = 2, 8, 32
    hidden_features = 4 * in_features
    out_features = in_features

    key = jax.random.PRNGKey(0)
    kx, kw1, kb1, kw2, kb2 = jax.random.split(key, 5)

    x = jax.random.normal(kx, (batch, seq, in_features), dtype=jnp.float32)

    # Deterministic synthetic parameter init (PyTorch nn.Linear shapes).
    w1 = jax.random.normal(kw1, (hidden_features, in_features), jnp.float32) * 0.05
    b1 = jax.random.normal(kb1, (hidden_features,), jnp.float32) * 0.05
    w2 = jax.random.normal(kw2, (out_features, hidden_features), jnp.float32) * 0.05
    b2 = jax.random.normal(kb2, (out_features,), jnp.float32) * 0.05

    # f32 path + reference check (x @ W1^T + b1 -> gelu_tanh -> @ W2^T + b2).
    out = jax.block_until_ready(fused_mlp(x, w1, b1, w2, b2))
    pre = x @ w1.T + b1
    ref = _apply_activation(pre, "gelu_approx") @ w2.T + b2
    assert out.shape == (batch, seq, out_features)
    assert jnp.allclose(out, ref, atol=1e-4, rtol=1e-4), float(
        jnp.max(jnp.abs(out - ref)))

    # bf16 path (exercises the native bf16 MXU route; looser tolerance).
    out_b = jax.block_until_ready(
        fused_mlp(x.astype(jnp.bfloat16),
                  w1.astype(jnp.bfloat16), b1.astype(jnp.bfloat16),
                  w2.astype(jnp.bfloat16), b2.astype(jnp.bfloat16)))
    assert out_b.shape == (batch, seq, out_features)
    assert jnp.allclose(out_b.astype(jnp.float32), ref, atol=5e-2, rtol=5e-2)

    print("KERNEL_OK")
</pallas_src>

<mosaic_0001>
module attributes {stable_mosaic.version = 11 : i64} {
  func.func @fused_mlp_kernel(%arg0: i32, %arg1: i32, %arg2: memref<16x128xf32, #tpu.memory_space<vmem>>, %arg3: memref<128x128xf32, #tpu.memory_space<vmem>>, %arg4: memref<1x128xf32, #tpu.memory_space<vmem>>, %arg5: memref<128x128xf32, #tpu.memory_space<vmem>>, %arg6: memref<1x128xf32, #tpu.memory_space<vmem>>, %arg7: memref<16x128xf32, #tpu.memory_space<vmem>>, %arg8: memref<16x128xf32, #tpu.memory_space<vmem>>) attributes {dimension_semantics = [#tpu.dimension_semantics<parallel>, #tpu.dimension_semantics<arbitrary>], iteration_bounds = array<i64: 1, 1>, scalar_prefetch = 0 : i64, scratch_operands = 1 : i64, tpu.core_type = #tpu.core_type<tc>, window_params = [{transform_indices = @transform_0, window_bounds = array<i64: 16, 128>}, {transform_indices = @transform_1, window_bounds = array<i64: 128, 128>}, {transform_indices = @transform_2, window_bounds = array<i64: 1, 128>}, {transform_indices = @transform_3, window_bounds = array<i64: 128, 128>}, {pipeline_mode = #tpu.pipeline_mode<synchronous>, transform_indices = @transform_4, window_bounds = array<i64: 1, 128>}, {transform_indices = @transform_5, window_bounds = array<i64: 16, 128>}]} {
    %c0_i32 = arith.constant 0 : i32
    %0 = arith.cmpi eq, %arg1, %c0_i32 : i32
    %1 = arith.extui %0 : i1 to i32
    %c0_i32_0 = arith.constant 0 : i32
    %2 = arith.cmpi ne, %1, %c0_i32_0 : i32
    scf.if %2 {
      %cst_19 = arith.constant 0.000000e+00 : f32
      %30 = vector.broadcast %cst_19 : f32 to vector<16x128xf32>
      %c0_20 = arith.constant 0 : index
      %c0_21 = arith.constant 0 : index
      %31 = vector.load %arg8[%c0_20, %c0_21] : memref<16x128xf32, #tpu.memory_space<vmem>>, vector<16x128xf32>
      tpu.vector_store %arg8[%c0_20, %c0_21], %30 {strides = array<i32>} : memref<16x128xf32, #tpu.memory_space<vmem>>, vector<16x128xf32>,
    } else {
    }
    %c0 = arith.constant 0 : index
    %c0_1 = arith.constant 0 : index
    %3 = vector.load %arg2[%c0, %c0_1] : memref<16x128xf32, #tpu.memory_space<vmem>>, vector<16x128xf32>
    %c0_2 = arith.constant 0 : index
    %c0_3 = arith.constant 0 : index
    %4 = vector.load %arg3[%c0_2, %c0_3] : memref<128x128xf32, #tpu.memory_space<vmem>>, vector<128x128xf32>
    %cst = arith.constant dense<0.000000e+00> : vector<16x128xf32>
    %5 = tpu.matmul %3, %4, %cst {dimension_numbers = #tpu.dot_dimension_numbers<[1], [1], [0], [0], [0, 0, 1, 0], [], []>} : vector<16x128xf32>, vector<128x128xf32>, vector<16x128xf32> -> vector<16x128xf32>
    %c0_4 = arith.constant 0 : index
    %c0_5 = arith.constant 0 : index
    %6 = vector.load %arg4[%c0_4, %c0_5] : memref<1x128xf32, #tpu.memory_space<vmem>>, vector<1x128xf32>
    %7 = vector.broadcast %6 : vector<1x128xf32> to vector<16x128xf32>
    %8 = arith.addf %5, %7 : vector<16x128xf32>
    %cst_6 = arith.constant 5.000000e-01 : f32
    %9 = vector.broadcast %cst_6 : f32 to vector<16x128xf32>
    %10 = arith.mulf %9, %8 : vector<16x128xf32>
    %cst_7 = arith.constant 4.471500e-02 : f32
    %11 = vector.broadcast %cst_7 : f32 to vector<16x128xf32>
    %12 = arith.mulf %11, %8 : vector<16x128xf32>
    %13 = arith.mulf %12, %8 : vector<16x128xf32>
    %14 = arith.mulf %13, %8 : vector<16x128xf32>
    %15 = arith.addf %8, %14 : vector<16x128xf32>
    %cst_8 = arith.constant 0.797884583 : f32
    %16 = vector.broadcast %cst_8 : f32 to vector<16x128xf32>
    %17 = arith.mulf %16, %15 : vector<16x128xf32>
    %18 = math.tanh %17 : vector<16x128xf32>
    %cst_9 = arith.constant 1.000000e+00 : f32
    %19 = vector.broadcast %cst_9 : f32 to vector<16x128xf32>
    %20 = arith.addf %19, %18 : vector<16x128xf32>
    %21 = arith.mulf %10, %20 : vector<16x128xf32>
    %c0_10 = arith.constant 0 : index
    %c0_11 = arith.constant 0 : index
    %22 = vector.load %arg5[%c0_10, %c0_11] : memref<128x128xf32, #tpu.memory_space<vmem>>, vector<128x128xf32>
    %c0_12 = arith.constant 0 : index
    %c0_13 = arith.constant 0 : index
    %23 = vector.load %arg8[%c0_12, %c0_13] : memref<16x128xf32, #tpu.memory_space<vmem>>, vector<16x128xf32>
    %cst_14 = arith.constant dense<0.000000e+00> : vector<16x128xf32>
    %24 = tpu.matmul %21, %22, %cst_14 {dimension_numbers = #tpu.dot_dimension_numbers<[1], [1], [0], [0], [0, 0, 1, 0], [], []>} : vector<16x128xf32>, vector<128x128xf32>, vector<16x128xf32> -> vector<16x128xf32>
    %25 = arith.addf %23, %24 : vector<16x128xf32>
    %c0_15 = arith.constant 0 : index
    %c0_16 = arith.constant 0 : index
    %26 = vector.load %arg8[%c0_15, %c0_16] : memref<16x128xf32, #tpu.memory_space<vmem>>, vector<16x128xf32>
    tpu.vector_store %arg8[%c0_15, %c0_16], %25 {strides = array<i32>} : memref<16x128xf32, #tpu.memory_space<vmem>>, vector<16x128xf32>,
    %c0_i32_17 = arith.constant 0 : i32
    %27 = arith.cmpi eq, %arg1, %c0_i32_17 : i32
    %28 = arith.extui %27 : i1 to i32
    %c0_i32_18 = arith.constant 0 : i32
    %29 = arith.cmpi ne, %28, %c0_i32_18 : i32
    scf.if %29 {
      %c0_19 = arith.constant 0 : index
      %c0_20 = arith.constant 0 : index
      %30 = vector.load %arg8[%c0_19, %c0_20] : memref<16x128xf32, #tpu.memory_space<vmem>>, vector<16x128xf32>
      %c0_21 = arith.constant 0 : index
      %c0_22 = arith.constant 0 : index
      %31 = vector.load %arg6[%c0_21, %c0_22] : memref<1x128xf32, #tpu.memory_space<vmem>>, vector<1x128xf32>
      %32 = vector.broadcast %31 : vector<1x128xf32> to vector<16x128xf32>
      %33 = arith.addf %30, %32 : vector<16x128xf32>
      %c0_23 = arith.constant 0 : index
      %c0_24 = arith.constant 0 : index
      %34 = vector.load %arg7[%c0_23, %c0_24] : memref<16x128xf32, #tpu.memory_space<vmem>>, vector<16x128xf32>
      tpu.vector_store %arg7[%c0_23, %c0_24], %33 {strides = array<i32>} : memref<16x128xf32, #tpu.memory_space<vmem>>, vector<16x128xf32>,
    } else {
    }
    return
  }
  func.func @transform_0(%arg0: i32, %arg1: i32) -> (i32, i32) {
    %c0_i32 = arith.constant 0 : i32
    %c0_i32_0 = arith.constant 0 : i32
    return %arg0, %c0_i32 : i32, i32
  }
  func.func @transform_1(%arg0: i32, %arg1: i32) -> (i32, i32) {
    %c0_i32 = arith.constant 0 : i32
    %c0_i32_0 = arith.constant 0 : i32
    return %arg1, %c0_i32 : i32, i32
  }
  func.func @transform_2(%arg0: i32, %arg1: i32) -> (i32, i32) {
    %c0_i32 = arith.constant 0 : i32
    %c0_i32_0 = arith.constant 0 : i32
    return %c0_i32, %arg1 : i32, i32
  }
  func.func @transform_3(%arg0: i32, %arg1: i32) -> (i32, i32) {
    %c0_i32 = arith.constant 0 : i32
    %c0_i32_0 = arith.constant 0 : i32
    return %c0_i32, %arg1 : i32, i32
  }
  func.func @transform_4(%arg0: i32, %arg1: i32) -> (i32, i32) {
    %c0_i32 = arith.constant 0 : i32
    %c0_i32_0 = arith.constant 0 : i32
    %c0_i32_1 = arith.constant 0 : i32
    return %c0_i32, %c0_i32_0 : i32, i32
  }
  func.func @transform_5(%arg0: i32, %arg1: i32) -> (i32, i32) {
    %c0_i32 = arith.constant 0 : i32
    %c0_i32_0 = arith.constant 0 : i32
    return %arg0, %c0_i32 : i32, i32
  }
}

</mosaic_0001>

<llo_original>
// kernel: fused_mlp.1
$region0: #{fused_mlp.1}
  #allocation0 [shape = 'u32[]', space=smem, size = 0x4, offset = 0x4, fixed_abs, tag = 'smem constant byte address 0x4 - core index']
  #allocation1 [shape = 'u32[144,128]{1,0:T(1,128)}', space=vmem, size = 0x12000, scoped, tag = 'internal scratch']
  #allocation2 [shape = 'f32[16,128]{1,0:T(8,128)}', space=vmem, size = 0x2000, scoped, tag = 'scratch operand']
  %s0 = inlined_call_operand.vmem [shape: f32[16,128], index: 0, kind: input, shape index: {}]
  %s1 = inlined_call_operand.vmem [shape: f32[128,128], index: 1, kind: input, shape index: {}]
  %s2 = inlined_call_operand.vmem [shape: f32[1,128], index: 2, kind: input, shape index: {}]
  %s3 = inlined_call_operand.vmem [shape: f32[128,128], index: 3, kind: input, shape index: {}]
  %s4 = inlined_call_operand.vmem [shape: f32[1,128], index: 4, kind: input, shape index: {}]
  %s5 = inlined_call_operand.vmem [shape: f32[16,128], index: 5, kind: output, shape index: {}]
  %s6 = sld [smem:[#allocation0]]
  $region38: #{fused_mlp.1} parent=0
    _
  %s8 = ssub.s32 1, %s6
  %s9 = scalar_select 0, %s8, %s6
  // Predicated region
  $region2: #{fused_mlp.1} parent=0 // pred_check
    _
  $region3: #{fused_mlp.1} parent=0 // pred_check_branch
    %11 = sbr.rel (0) target = $region5
  $region4: #{fused_mlp.1} parent=0 // pred_region
    _
  $region5: #{fused_mlp.1} parent=0 // pred_fallthru
    _
  // Predicated region
  $region6: #{fused_mlp.1} parent=0 // pred_check
    _
  $region7: #{fused_mlp.1} parent=0 // pred_check_branch
    %13 = sbr.rel (0) target = $region9
  $region8: #{fused_mlp.1} parent=0 // pred_region
    _
  $region9: #{fused_mlp.1} parent=0 // pred_fallthru
    _
  // Predicated region
  $region10: #{fused_mlp.1} parent=0 // pred_check
    _
  $region11: #{fused_mlp.1} parent=0 // pred_check_branch
    %15 = sbr.rel (0) target = $region13
  $region12: #{fused_mlp.1} parent=0 // pred_region
    _
  $region13: #{fused_mlp.1} parent=0 // pred_fallthru
    _
  // Predicated region
  $region14: #{fused_mlp.1} parent=0 // pred_check
    _
  $region15: #{fused_mlp.1} parent=0 // pred_check_branch
    %17 = sbr.rel (0) target = $region17
  $region16: #{fused_mlp.1} parent=0 // pred_region
    _
  $region17: #{fused_mlp.1} parent=0 // pred_fallthru
    _
  // Predicated region
  $region18: #{fused_mlp.1} parent=0 // pred_check
    _
  $region19: #{fused_mlp.1} parent=0 // pred_check_branch
    %19 = sbr.rel (0) target = $region21
  $region20: #{fused_mlp.1} parent=0 // pred_region
    _
  $region21: #{fused_mlp.1} parent=0 // pred_fallthru
    _
  %p20 = scmp.eq.s32.totalorder 0, 0
  // Predicated region
  $region22: #{fused_mlp.1} parent=0 // pred_check
    %p21 = pneg %p20
  $region23: #{fused_mlp.1} parent=0 // pred_check_branch
    %23 = sbr.rel (%p21) target = $region25
  $region24: #{fused_mlp.1} parent=0 // pred_region
    %24 = vst [vmem:[#allocation2] sm:$0xff] 0.0
    %25 = vst [vmem:[#allocation2 + $0x8] sm:$0xff] 0.0
  $region25: #{fused_mlp.1} parent=0 // pred_fallthru
    _
  %v26 = vld [vmem:[%s0] sm:$0xff]
  %v27 = vld [vmem:[%s0 + $0x8] sm:$0xff]
  %v28 = vld [vmem:[%s1] sm:$0xff]
  %v29 = vld [vmem:[%s1 + $0x8] sm:$0xff]
  %v30 = vld [vmem:[%s1 + $0x10] sm:$0xff]
  %v31 = vld [vmem:[%s1 + $0x18] sm:$0xff]
  %v32 = vld [vmem:[%s1 + $0x20] sm:$0xff]
  %v33 = vld [vmem:[%s1 + $0x28] sm:$0xff]
  %v34 = vld [vmem:[%s1 + $0x30] sm:$0xff]
  %v35 = vld [vmem:[%s1 + $0x38] sm:$0xff]
  %v36 = vld [vmem:[%s1 + $0x40] sm:$0xff]
  %v37 = vld [vmem:[%s1 + $0x48] sm:$0xff]
  %v38 = vld [vmem:[%s1 + $0x50] sm:$0xff]
  %v39 = vld [vmem:[%s1 + $0x58] sm:$0xff]
  %v40 = vld [vmem:[%s1 + $0x60] sm:$0xff]
  %v41 = vld [vmem:[%s1 + $0x68] sm:$0xff]
  %v42 = vld [vmem:[%s1 + $0x70] sm:$0xff]
  %v43 = vld [vmem:[%s1 + $0x78] sm:$0xff]
  %v44 = vld [vmem:[%s2] sm:$0x1]
  %v46 = vlaneseq
  %v47 = vshrl.u32 %v46, 7
  %v48 = vsub.s32 0, %v47
  %v49 = vrot.slane %v44, %v48
  %51 = vmatprep.subr.mxu0 0.0
  %52 = vmatpush1.xpose.msra.mxu0 %v43
  %53 = vmatprep.subr.mxu0 0.0
  %54 = vmatpush1.xpose.msra.mxu0 %v42
  %55 = vmatprep.subr.mxu0 0.0
  %56 = vmatpush1.xpose.msra.mxu0 %v41
  %57 = vmatprep.subr.mxu0 0.0
  %58 = vmatpush1.xpose.msra.mxu0 %v40
  %59 = vmatprep.subr.mxu0 0.0
  %60 = vmatpush1.xpose.msra.mxu0 %v39
  %61 = vmatprep.subr.mxu0 0.0
  %62 = vmatpush1.xpose.msra.mxu0 %v38
  %63 = vmatprep.subr.mxu0 0.0
  %64 = vmatpush1.xpose.msra.mxu0 %v37
  %65 = vmatprep.subr.mxu0 0.0
  %66 = vmatpush1.xpose.msra.mxu0 %v36
  %67 = vmatprep.subr.mxu0 0.0
  %68 = vmatpush1.xpose.msra.mxu0 %v35
  %69 = vmatprep.subr.mxu0 0.0
  %70 = vmatpush1.xpose.msra.mxu0 %v34
  %71 = vmatprep.subr.mxu0 0.0
  %72 = vmatpush1.xpose.msra.mxu0 %v33
  %73 = vmatprep.subr.mxu0 0.0
  %74 = vmatpush1.xpose.msra.mxu0 %v32
  %75 = vmatprep.subr.mxu0 0.0
  %76 = vmatpush1.xpose.msra.mxu0 %v31
  %77 = vmatprep.subr.mxu0 0.0
  %78 = vmatpush1.xpose.msra.mxu0 %v30
  %79 = vmatprep.subr.mxu0 0.0
  %80 = vmatpush1.xpose.msra.mxu0 %v29
  %81 = vmatprep.subr.mxu0 0.0
  %82 = vmatpush1.xpose.msra.mxu0 %v28
  %83 = vmatprep.subr.mxu0 0.0
  %84 = vmatpush2.xpose.msra.mxu0 0.0
  %85 = vmatprep.subr.mxu0 0.0
  %86 = vmatpush2.xpose.msra.mxu0 0.0
  %87 = vmatprep.subr.mxu0 0.0
  %88 = vmatpush2.xpose.msra.mxu0 0.0
  %89 = vmatprep.subr.mxu0 0.0
  %90 = vmatpush2.xpose.msra.mxu0 0.0
  %91 = vmatprep.subr.mxu0 0.0
  %92 = vmatpush2.xpose.msra.mxu0 0.0
  %93 = vmatprep.subr.mxu0 0.0
  %94 = vmatpush2.xpose.msra.mxu0 0.0
  %95 = vmatprep.subr.mxu0 0.0
  %96 = vmatpush2.xpose.msra.mxu0 0.0
  %97 = vmatprep.subr.mxu0 0.0
  %98 = vmatpush2.xpose.msra.mxu0 0.0
  %99 = vmatprep.subr.mxu0 0.0
  %100 = vmatpush2.xpose.msra.mxu0 0.0
  %101 = vmatprep.subr.mxu0 0.0
  %102 = vmatpush2.xpose.msra.mxu0 0.0
  %103 = vmatprep.subr.mxu0 0.0
  %104 = vmatpush2.xpose.msra.mxu0 0.0
  %105 = vmatprep.subr.mxu0 0.0
  %106 = vmatpush2.xpose.msra.mxu0 0.0
  %107 = vmatprep.subr.mxu0 0.0
  %108 = vmatpush2.xpose.msra.mxu0 0.0
  %109 = vmatprep.subr.mxu0 0.0
  %110 = vmatpush2.xpose.msra.mxu0 0.0
  %111 = vmatprep.subr.mxu0 0.0
  %112 = vmatpush2.xpose.msra.mxu0 0.0
  %113 = vmatprep.subr.mxu0 0.0
  %114 = vmatpush2.xpose.msra.mxu0 0.0
  %115 = vmatprep.mubr.f32.mxu0 0.0
  %116 = vmatmul.mubr.f32.gmra.mxu0 %v26
  %v117 = vpop.f32.mrf.mxu0
  %v118 = vadd.f32 %v49, %v117
  %v119 = vpop.f32.mrf.mxu0
  %120 = vmatprep.mubr.f32.mxu0 0.0
  %121 = vmatmul.mubr.f32.gmra.mxu0 %v27
  %v122 = vpop.f32.mrf.mxu0
  %v123 = vadd.f32 %v49, %v122
  %v124 = vpop.f32.mrf.mxu0
  %125 = vdwg.mxu0
  %v126 = vmul.f32 %v118, 0.5
  %v127 = vmul.f32 %v123, 0.5
  %v128 = vmul.f32 %v118, 0.044715
  %v129 = vmul.f32 %v123, 0.044715
  %v130 = vmul.f32 %v128, %v118
  %v131 = vmul.f32 %v129, %v123
  %v132 = vmul.f32 %v130, %v118
  %v133 = vmul.f32 %v131, %v123
  %v134 = vadd.f32 %v118, %v132
  %v135 = vadd.f32 %v123, %v133
  %v136 = vmul.f32 %v134, 0.7978846
  %v137 = vmul.f32 %v135, 0.7978846
  %v138 = vtanh.pop %v136
  %v139 = vtanh.pop %v137
  %v140 = vadd.f32 %v138, 1.0
  %v141 = vadd.f32 %v139, 1.0
  %v142 = vmul.f32 %v126, %v140
  %v143 = vmul.f32 %v127, %v141
  %v144 = vld [vmem:[%s3] sm:$0xff]
  %v145 = vld [vmem:[%s3 + $0x8] sm:$0xff]
  %v146 = vld [vmem:[%s3 + $0x10] sm:$0xff]
  %v147 = vld [vmem:[%s3 + $0x18] sm:$0xff]
  %v148 = vld [vmem:[%s3 + $0x20] sm:$0xff]
  %v149 = vld [vmem:[%s3 + $0x28] sm:$0xff]
  %v150 = vld [vmem:[%s3 + $0x30] sm:$0xff]
  %v151 = vld [vmem:[%s3 + $0x38] sm:$0xff]
  %v152 = vld [vmem:[%s3 + $0x40] sm:$0xff]
  %v153 = vld [vmem:[%s3 + $0x48] sm:$0xff]
  %v154 = vld [vmem:[%s3 + $0x50] sm:$0xff]
  %v155 = vld [vmem:[%s3 + $0x58] sm:$0xff]
  %v156 = vld [vmem:[%s3 + $0x60] sm:$0xff]
  %v157 = vld [vmem:[%s3 + $0x68] sm:$0xff]
  %v158 = vld [vmem:[%s3 + $0x70] sm:$0xff]
  %v159 = vld [vmem:[%s3 + $0x78] sm:$0xff]
  %v160 = vld [vmem:[#allocation2] sm:$0xff]
  %v161 = vld [vmem:[#allocation2 + $0x8] sm:$0xff]
  %162 = vmatprep.subr.mxu0 0.0
  %163 = vmatpush1.xpose.msra.mxu0 %v159
  %164 = vmatprep.subr.mxu0 0.0
  %165 = vmatpush1.xpose.msra.mxu0 %v158
  %166 = vmatprep.subr.mxu0 0.0
  %167 = vmatpush1.xpose.msra.mxu0 %v157
  %168 = vmatprep.subr.mxu0 0.0
  %169 = vmatpush1.xpose.msra.mxu0 %v156
  %170 = vmatprep.subr.mxu0 0.0
  %171 = vmatpush1.xpose.msra.mxu0 %v155
  %172 = vmatprep.subr.mxu0 0.0
  %173 = vmatpush1.xpose.msra.mxu0 %v154
  %174 = vmatprep.subr.mxu0 0.0
  %175 = vmatpush1.xpose.msra.mxu0 %v153
  %176 = vmatprep.subr.mxu0 0.0
  %177 = vmatpush1.xpose.msra.mxu0 %v152
  %178 = vmatprep.subr.mxu0 0.0
  %179 = vmatpush1.xpose.msra.mxu0 %v151
  %180 = vmatprep.subr.mxu0 0.0
  %181 = vmatpush1.xpose.msra.mxu0 %v150
  %182 = vmatprep.subr.mxu0 0.0
  %183 = vmatpush1.xpose.msra.mxu0 %v149
  %184 = vmatprep.subr.mxu0 0.0
  %185 = vmatpush1.xpose.msra.mxu0 %v148
  %186 = vmatprep.subr.mxu0 0.0
  %187 = vmatpush1.xpose.msra.mxu0 %v147
  %188 = vmatprep.subr.mxu0 0.0
  %189 = vmatpush1.xpose.msra.mxu0 %v146
  %190 = vmatprep.subr.mxu0 0.0
  %191 = vmatpush1.xpose.msra.mxu0 %v145
  %192 = vmatprep.subr.mxu0 0.0
  %193 = vmatpush1.xpose.msra.mxu0 %v144
  %194 = vmatprep.subr.mxu0 0.0
  %195 = vmatpush2.xpose.msra.mxu0 0.0
  %196 = vmatprep.subr.mxu0 0.0
  %197 = vmatpush2.xpose.msra.mxu0 0.0
  %198 = vmatprep.subr.mxu0 0.0
  %199 = vmatpush2.xpose.msra.mxu0 0.0
  %200 = vmatprep.subr.mxu0 0.0
  %201 = vmatpush2.xpose.msra.mxu0 0.0
  %202 = vmatprep.subr.mxu0 0.0
  %203 = vmatpush2.xpose.msra.mxu0 0.0
  %204 = vmatprep.subr.mxu0 0.0
  %205 = vmatpush2.xpose.msra.mxu0 0.0
  %206 = vmatprep.subr.mxu0 0.0
  %207 = vmatpush2.xpose.msra.mxu0 0.0
  %208 = vmatprep.subr.mxu0 0.0
  %209 = vmatpush2.xpose.msra.mxu0 0.0
  %210 = vmatprep.subr.mxu0 0.0
  %211 = vmatpush2.xpose.msra.mxu0 0.0
  %212 = vmatprep.subr.mxu0 0.0
  %213 = vmatpush2.xpose.msra.mxu0 0.0
  %214 = vmatprep.subr.mxu0 0.0
  %215 = vmatpush2.xpose.msra.mxu0 0.0
  %216 = vmatprep.subr.mxu0 0.0
  %217 = vmatpush2.xpose.msra.mxu0 0.0
  %218 = vmatprep.subr.mxu0 0.0
  %219 = vmatpush2.xpose.msra.mxu0 0.0
  %220 = vmatprep.subr.mxu0 0.0
  %221 = vmatpush2.xpose.msra.mxu0 0.0
  %222 = vmatprep.subr.mxu0 0.0
  %223 = vmatpush2.xpose.msra.mxu0 0.0
  %224 = vmatprep.subr.mxu0 0.0
  %225 = vmatpush2.xpose.msra.mxu0 0.0
  %226 = vmatprep.mubr.f32.mxu0 0.0
  %227 = vmatmul.mubr.f32.gmra.mxu0 %v142
  %v228 = vpop.f32.mrf.mxu0
  %v229 = vadd.f32 0.0, %v228
  %v230 = vpop.f32.mrf.mxu0
  %231 = vmatprep.mubr.f32.mxu0 0.0
  %232 = vmatmul.mubr.f32.gmra.mxu0 %v143
  %v233 = vpop.f32.mrf.mxu0
  %v234 = vadd.f32 0.0, %v233
  %v235 = vpop.f32.mrf.mxu0
  %236 = vdwg.mxu0
  %v237 = vadd.f32 %v160, %v229
  %v238 = vadd.f32 %v161, %v234
  %239 = vst [vmem:[#allocation2] sm:$0xff] %v237
  %240 = vst [vmem:[#allocation2 + $0x8] sm:$0xff] %v238
  // Predicated region
  $region26: #{fused_mlp.1} parent=0 // pred_check
    %p241 = pneg %p20
  $region27: #{fused_mlp.1} parent=0 // pred_check_branch
    %243 = sbr.rel (%p241) target = $region29
  $region28: #{fused_mlp.1} parent=0 // pred_region
    %v244 = vld [vmem:[#allocation2] sm:$0xff]
    %v245 = vld [vmem:[#allocation2 + $0x8] sm:$0xff]
    %v246 = vld [vmem:[%s4] sm:$0x1]
    %v248 = vlaneseq
    %v249 = vshrl.u32 %v248, 7
    %v250 = vsub.s32 0, %v249
    %v251 = vrot.slane %v246, %v250
    %v253 = vadd.f32 %v244, %v251
    %v254 = vadd.f32 %v245, %v251
    %255 = vst [vmem:[%s5] sm:$0xff] %v253
    %256 = vst [vmem:[%s5 + $0x8] sm:$0xff] %v254
  $region29: #{fused_mlp.1} parent=0 // pred_fallthru
    _
  // Predicated region
  $region30: #{fused_mlp.1} parent=0 // pred_check
    _
  $region31: #{fused_mlp.1} parent=0 // pred_check_branch
    %258 = sbr.rel (0) target = $region33
  $region32: #{fused_mlp.1} parent=0 // pred_region
    _
  $region33: #{fused_mlp.1} parent=0 // pred_fallthru
    _
  // Predicated region
  $region34: #{fused_mlp.1} parent=0 // pred_check
    _
  $region35: #{fused_mlp.1} parent=0 // pred_check_branch
    %260 = sbr.rel (0) target = $region37
  $region36: #{fused_mlp.1} parent=0 // pred_region
    _
  $region37: #{fused_mlp.1} parent=0 // pred_fallthru
    _

</llo_original>
